<compile_context>
chip_gen: v7x
topology: tpu7x:2x2x1
jax: 0.10.0
libtpu: 0.0.40
codegen_flags: <defaults>
</compile_context>

<pallas_src>
import functools
import time

import jax
import jax.numpy as jnp
from jax.experimental import pallas as pl
from jax.experimental.pallas import tpu as pltpu


# ----------------------------------------------------------------------------
# Pallas kernel: fused 3x3 conv (banded, on-chip halo) -> ReLU -> 1x1 conv
# ----------------------------------------------------------------------------
def _people_flow_kernel(x_ref, w1_ref, b1_ref, w2_ref, b2_ref, o_ref, *, bg, H):
    # x_ref : [bg, H+2, (W+2)*Cin] bf16  zero-padded images, (W+2, Cin) in lanes
    # w1_ref: [3, (W+2)*Cin, W*C1] bf16  per-kernel-row banded conv1 weights
    # b1_ref: [1, W*C1]            f32
    # w2_ref: [W*C1, W*C2]         bf16  block-diagonal 1x1-conv weights
    # b2_ref: [1, W*C2]            f32
    # o_ref : [bg, H, W*C2]        f32   lane-dense output (W*C2 >= 128 lanes)
    xs = [x_ref[b] for b in range(bg)]            # load each padded image once
    n_mid = b1_ref.shape[1]
    acc = jnp.zeros((bg * H, n_mid), jnp.float32)

    # conv1 == 3 banded matmuls (one per kernel row kh). Each operand is the
    # kh-shifted FULL padded row slab -- no lane slicing/rotation at all; the
    # kw taps live inside the banded weight matrix. Images of the group are
    # stacked along M (sublanes) so every dot runs with M = bg*H.
    for kh in range(3):
        if bg == 1:
            slab = xs[0][kh:kh + H, :]                            # [H, (W+2)*Cin]
        else:
            slab = jnp.concatenate([xb[kh:kh + H, :] for xb in xs], axis=0)
        acc = acc + jnp.dot(slab, w1_ref[kh],
                            preferred_element_type=jnp.float32)

    h = jnp.maximum(acc + b1_ref[...], 0.0)                       # f32 bias+ReLU (VPU)
    y = jnp.dot(h.astype(w2_ref.dtype), w2_ref[...],
                preferred_element_type=jnp.float32) + b2_ref[...]
    for b in range(bg):
        o_ref[b] = y[b * H:(b + 1) * H, :].astype(o_ref.dtype)


def _const_spec(block_shape, index_map):
    """BlockSpec for operands whose block never changes -> single-buffered."""
    try:
        return pl.BlockSpec(block_shape, index_map,
                            pipeline_mode=pl.Buffered(buffer_count=1))
    except (AttributeError, TypeError):
        # Older jax without pipeline_mode support: fall back to default buffering.
        return pl.BlockSpec(block_shape, index_map)


def _pick_batch_group(B, H):
    """Images per grid step, stacked along the matmul M (sublane) dim.

    Targets M = bg*H in the 128-256 range to fill MXU rows, but keeps >= 2
    grid steps whenever B >= 2 so both v7x TensorCores get a 'parallel' unit.
    """
    max_bg = max(1, 256 // max(H, 1))
    if B >= 2:
        max_bg = min(max_bg, B // 2)
    max_bg = max(1, min(max_bg, B))
    for bg in range(max_bg, 0, -1):
        if B % bg == 0:
            return bg
    return 1


def _people_flow_pallas(x_flat, w1band, b1big, w2big, b2big,
                        *, H, W, c_in, c_mid, c_out):
    B = x_flat.shape[0]
    bg = _pick_batch_group(B, H)
    n_groups = B // bg
    kernel = functools.partial(_people_flow_kernel, bg=bg, H=H)

    # Advisory cost so XLA can schedule surrounding layout ops around the call.
    flops = 2 * B * H * (3 * (W + 2) * c_in * W * c_mid + W * c_mid * W * c_out)
    bytes_accessed = (x_flat.size * 2 + w1band.size * 2 + w2big.size * 2
                      + (b1big.size + b2big.size) * 4 + B * H * W * c_out * 4)

    # Explicit VMEM budget: actual footprint (~1 MiB here) with margin, clamped
    # so it stays inside even v7x's scoped limit.
    vmem_bytes = (2 * bg * (H + 2) * (W + 2) * c_in * 2        # input  (double buffer)
                  + 3 * (W + 2) * c_in * W * c_mid * 2         # w1band (single buffer)
                  + W * c_mid * W * c_out * 2                  # w2     (single buffer)
                  + (W * c_mid + W * c_out) * 4                # biases
                  + 2 * bg * H * W * c_out * 4                 # output (double buffer)
                  + 3 * bg * H * (W * c_mid + W * c_out) * 4)  # live f32 temporaries
    vmem_limit = int(min(max(4 * vmem_bytes, 8 << 20), 32 << 20))

    return pl.pallas_call(
        kernel,
        out_shape=jax.ShapeDtypeStruct((B, H, W * c_out), jnp.float32),
        grid_spec=pltpu.PrefetchScalarGridSpec(
            num_scalar_prefetch=0,
            grid=(n_groups,),          # one batch group per grid step
            in_specs=[
                pl.BlockSpec((bg, H + 2, (W + 2) * c_in), lambda g: (g, 0, 0)),
                _const_spec((3, (W + 2) * c_in, W * c_mid), lambda g: (0, 0, 0)),
                _const_spec((1, W * c_mid), lambda g: (0, 0)),
                _const_spec((W * c_mid, W * c_out), lambda g: (0, 0)),
                _const_spec((1, W * c_out), lambda g: (0, 0)),
            ],
            out_specs=pl.BlockSpec((bg, H, W * c_out), lambda g: (g, 0, 0)),
        ),
        compiler_params=pltpu.CompilerParams(
            dimension_semantics=("parallel",),
            vmem_limit_bytes=vmem_limit,
        ),
        cost_estimate=pl.CostEstimate(flops=flops, transcendentals=0,
                                      bytes_accessed=bytes_accessed),
    )(x_flat, w1band, b1big, w2big, b2big)


# ----------------------------------------------------------------------------
# Jitted forward: layout plumbing fuses in XLA, compute runs in the kernel
# ----------------------------------------------------------------------------
@jax.jit
def _people_flow_forward(x_nchw, w1band, b1big, w2big, b2big):
    B, c_in, H, W = x_nchw.shape
    c_mid = b1big.shape[1] // W
    c_out = b2big.shape[1] // W

    # bf16 BEFORE the layout ops: transpose + pad then move half the bytes.
    x_bf = x_nchw.astype(jnp.bfloat16)
    x_nhwc = jnp.transpose(x_bf, (0, 2, 3, 1))             # NCHW -> NHWC
    x_pad = jnp.pad(x_nhwc, ((0, 0), (1, 1), (1, 1), (0, 0)))
    x_flat = x_pad.reshape(B, H + 2, (W + 2) * c_in)       # fold (W+2, Cin) into lanes

    y = _people_flow_pallas(x_flat, w1band, b1big, w2big, b2big,
                            H=H, W=W, c_in=c_in, c_mid=c_mid, c_out=c_out)
    # [B, H, W*C2] -> [B, H, W, C2] -> NCHW.  (If the downstream consumer can
    # take NHWC, drop this transpose and return y.reshape(B, H, W, c_out).)
    return jnp.transpose(y.reshape(B, H, W, c_out), (0, 3, 1, 2))


# ----------------------------------------------------------------------------
# Representative people-flow head (holds weights, calls the fused kernel)
# ----------------------------------------------------------------------------
class PeopleFlowHead:
    """Conv2d(Cin->C1, 3, pad=1) -> ReLU -> Conv2d(C1->C2, 1), fused in Pallas.

    Weight-layout note: w1 is flattened [9*Cin, C1] with taps (kh, kw) row-major
    and channels fastest-varying; an injected people_flow with a different
    flatten order must adapt `_fold` accordingly.
    """

    def __init__(self, key, c_in=4, c_mid=32, c_out=16):
        k1, k2, k3, k4 = jax.random.split(key, 4)
        self.c_in, self.c_mid, self.c_out = c_in, c_mid, c_out
        self.w1 = jax.random.normal(k1, (3 * 3 * c_in, c_mid), jnp.float32) * 0.05
        self.b1 = jax.random.normal(k2, (1, c_mid), jnp.float32) * 0.01
        self.w2 = jax.random.normal(k3, (c_mid, c_out), jnp.float32) * 0.05
        self.b2 = jax.random.normal(k4, (1, c_out), jnp.float32) * 0.01
        self._folded = {}   # W -> (w1band, b1big, w2big, b2big), built once per W

    def _fold(self, W):
        # One-time (per W) weight folding. Previously this O(W^2) work ran on
        # every forward and dominated the end-to-end cost.
        if W not in self._folded:
            c_in, c_mid, c_out = self.c_in, self.c_mid, self.c_out
            w1_taps = self.w1.reshape(3, 3, c_in, c_mid)          # [kh, kw, ci, cm]
            rows = []
            for kh in range(3):
                band = jnp.zeros(((W + 2) * c_in, W * c_mid), jnp.float32)
                for kw in range(3):
                    # shift[p, w] == 1 iff padded column p == w + kw.
                    shift = jnp.eye(W + 2, W, k=-kw, dtype=jnp.float32)
                    band = band + (shift[:, None, :, None]
                                   * w1_taps[kh, kw][None, :, None, :]
                                   ).reshape((W + 2) * c_in, W * c_mid)
                rows.append(band)
            w1band = jnp.stack(rows, axis=0).astype(jnp.bfloat16)  # [3,(W+2)Cin,W*C1]
            eye = jnp.eye(W, dtype=jnp.float32)
            w2big = (eye[:, None, :, None] * self.w2[None, :, None, :]
                     ).reshape(W * c_mid, W * c_out).astype(jnp.bfloat16)
            b1big = jnp.tile(self.b1, (1, W))                      # [1, W*C1] f32
            b2big = jnp.tile(self.b2, (1, W))                      # [1, W*C2] f32
            # TODO(synk): for W >~ 64 add a W-tile grid axis (block-banded over a
            # W tile) instead of these O(W^2) folded weights (v7x VMEM budget).
            self._folded[W] = tuple(jax.block_until_ready(a)
                                    for a in (w1band, b1big, w2big, b2big))
        return self._folded[W]

    def __call__(self, x_nchw):
        assert x_nchw.shape[1] == self.c_in
        w1band, b1big, w2big, b2big = self._fold(x_nchw.shape[3])
        return _people_flow_forward(x_nchw, w1band, b1big, w2big, b2big)


# ----------------------------------------------------------------------------
# MultiViewPipeline wrapper (mirrors the PyTorch forward semantics)
# ----------------------------------------------------------------------------
class MultiViewPipeline:
    def __init__(self, people_flow, object_tracker=None, flow_consistency=None):
        # object_tracker / flow_consistency are unused in the reference forward.
        self.people_flow = people_flow

    def forward(self, input_data):
        time_stat = dict()
        end = time.time()
        pred = None
        if self.people_flow is not None:
            pred = self.people_flow(input_data)
            # Block so flow_time measures execution, not just async dispatch.
            pred = jax.block_until_ready(pred)
        time_stat['flow_time'] = time.time() - end
        return {'pred': pred, 'time_stats': time_stat}

    __call__ = forward


# ----------------------------------------------------------------------------
# Reference (pure JAX, mirrors the kernel's bf16 quantization) for checking
# ----------------------------------------------------------------------------
def _reference(x_nchw, head: PeopleFlowHead):
    B, C, H, W = x_nchw.shape
    f32 = jnp.float32
    x_nhwc = jnp.transpose(x_nchw, (0, 2, 3, 1))
    xp = jnp.pad(x_nhwc, ((0, 0), (1, 1), (1, 1), (0, 0)))
    xp = xp.astype(jnp.bfloat16).astype(f32)
    cols = [xp[:, kh:kh + H, kw:kw + W, :] for kh in range(3) for kw in range(3)]
    patches = jnp.concatenate(cols, axis=-1).reshape(B * H * W, 9 * C)
    w1 = head.w1.astype(jnp.bfloat16).astype(f32)
    w2 = head.w2.astype(jnp.bfloat16).astype(f32)
    h = jnp.maximum(patches @ w1 + head.b1, 0.0)
    h = h.astype(jnp.bfloat16).astype(f32)
    y = h @ w2 + head.b2
    return jnp.transpose(y.reshape(B, H, W, head.c_out), (0, 3, 1, 2))


if __name__ == "__main__":
    key = jax.random.PRNGKey(0)
    k_x, k_w, k_x2 = jax.random.split(key, 3)

    B, C, H, W = 2, 4, 16, 16
    x = jax.random.normal(k_x, (B, C, H, W), jnp.float32)

    head = PeopleFlowHead(k_w, c_in=C, c_mid=32, c_out=16)
    pipeline = MultiViewPipeline(head)

    # Warm up once (jit trace + compile + one-time weight fold) so flow_time
    # below measures execution rather than compilation.
    jax.block_until_ready(head(x))

    out = pipeline(x)
    pred = jax.block_until_ready(out['pred'])

    ref = _reference(x, head)
    assert pred.shape == (B, 16, H, W), pred.shape
    assert jnp.allclose(pred, ref, atol=2e-3, rtol=2e-3), "mismatch vs reference"
    assert 'flow_time' in out['time_stats']

    # Exercise the batch-group (M-stacking) path: B=4 -> 2 images per grid step.
    x4 = jax.random.normal(k_x2, (4, C, H, W), jnp.float32)
    pred4 = jax.block_until_ready(head(x4))
    ref4 = _reference(x4, head)
    assert jnp.allclose(pred4, ref4, atol=2e-3, rtol=2e-3), "mismatch (grouped batch)"

    print("KERNEL_OK")
</pallas_src>

<mosaic_0001>
module attributes {stable_mosaic.version = 11 : i64} {
  func.func @_people_flow_kernel(%arg0: i32, %arg1: memref<1x18x72xbf16, #tpu.memory_space<vmem>>, %arg2: memref<3x72x512xbf16, #tpu.memory_space<vmem>>, %arg3: memref<1x512xf32, #tpu.memory_space<vmem>>, %arg4: memref<512x256xbf16, #tpu.memory_space<vmem>>, %arg5: memref<1x256xf32, #tpu.memory_space<vmem>>, %arg6: memref<1x16x256xf32, #tpu.memory_space<vmem>>) attributes {dimension_semantics = [#tpu.dimension_semantics<parallel>], iteration_bounds = array<i64: 2>, scalar_prefetch = 0 : i64, scratch_operands = 0 : i64, tpu.core_type = #tpu.core_type<tc>, window_params = [{transform_indices = @transform_0, window_bounds = array<i64: 1, 18, 72>}, {pipeline_mode = #tpu.pipeline_mode<synchronous>, transform_indices = @transform_1, window_bounds = array<i64: 3, 72, 512>}, {pipeline_mode = #tpu.pipeline_mode<synchronous>, transform_indices = @transform_2, window_bounds = array<i64: 1, 512>}, {pipeline_mode = #tpu.pipeline_mode<synchronous>, transform_indices = @transform_3, window_bounds = array<i64: 512, 256>}, {pipeline_mode = #tpu.pipeline_mode<synchronous>, transform_indices = @transform_4, window_bounds = array<i64: 1, 256>}, {transform_indices = @transform_5, window_bounds = array<i64: 1, 16, 256>}]} {
    %c0 = arith.constant 0 : index
    %c0_0 = arith.constant 0 : index
    %c0_1 = arith.constant 0 : index
    %0 = vector.load %arg1[%c0, %c0_0, %c0_1] : memref<1x18x72xbf16, #tpu.memory_space<vmem>>, vector<1x18x72xbf16>
    %1 = vector.shape_cast %0 : vector<1x18x72xbf16> to vector<18x72xbf16>
    %cst = arith.constant 0.000000e+00 : f32
    %2 = vector.broadcast %cst : f32 to vector<16x512xf32>
    %3 = vector.extract_strided_slice %1 {offsets = [0, 0], sizes = [16, 72], strides = [1, 1]} : vector<18x72xbf16> to vector<16x72xbf16>
    %c0_2 = arith.constant 0 : index
    %c0_3 = arith.constant 0 : index
    %c0_4 = arith.constant 0 : index
    %4 = vector.load %arg2[%c0_2, %c0_3, %c0_4] : memref<3x72x512xbf16, #tpu.memory_space<vmem>>, vector<1x72x512xbf16>
    %5 = vector.shape_cast %4 : vector<1x72x512xbf16> to vector<72x512xbf16>
    %cst_5 = arith.constant dense<0.000000e+00> : vector<16x512xf32>
    %6 = tpu.matmul %3, %5, %cst_5 {dimension_numbers = #tpu.dot_dimension_numbers<[1], [0], [0], [1], [0, 0, 1, 1], [], []>} : vector<16x72xbf16>, vector<72x512xbf16>, vector<16x512xf32> -> vector<16x512xf32>
    %7 = arith.addf %2, %6 : vector<16x512xf32>
    %8 = vector.extract_strided_slice %1 {offsets = [1, 0], sizes = [16, 72], strides = [1, 1]} : vector<18x72xbf16> to vector<16x72xbf16>
    %c1 = arith.constant 1 : index
    %c0_6 = arith.constant 0 : index
    %c0_7 = arith.constant 0 : index
    %9 = vector.load %arg2[%c1, %c0_6, %c0_7] : memref<3x72x512xbf16, #tpu.memory_space<vmem>>, vector<1x72x512xbf16>
    %10 = vector.shape_cast %9 : vector<1x72x512xbf16> to vector<72x512xbf16>
    %cst_8 = arith.constant dense<0.000000e+00> : vector<16x512xf32>
    %11 = tpu.matmul %8, %10, %cst_8 {dimension_numbers = #tpu.dot_dimension_numbers<[1], [0], [0], [1], [0, 0, 1, 1], [], []>} : vector<16x72xbf16>, vector<72x512xbf16>, vector<16x512xf32> -> vector<16x512xf32>
    %12 = arith.addf %7, %11 : vector<16x512xf32>
    %13 = vector.extract_strided_slice %1 {offsets = [2, 0], sizes = [16, 72], strides = [1, 1]} : vector<18x72xbf16> to vector<16x72xbf16>
    %c2 = arith.constant 2 : index
    %c0_9 = arith.constant 0 : index
    %c0_10 = arith.constant 0 : index
    %14 = vector.load %arg2[%c2, %c0_9, %c0_10] : memref<3x72x512xbf16, #tpu.memory_space<vmem>>, vector<1x72x512xbf16>
    %15 = vector.shape_cast %14 : vector<1x72x512xbf16> to vector<72x512xbf16>
    %cst_11 = arith.constant dense<0.000000e+00> : vector<16x512xf32>
    %16 = tpu.matmul %13, %15, %cst_11 {dimension_numbers = #tpu.dot_dimension_numbers<[1], [0], [0], [1], [0, 0, 1, 1], [], []>} : vector<16x72xbf16>, vector<72x512xbf16>, vector<16x512xf32> -> vector<16x512xf32>
    %17 = arith.addf %12, %16 : vector<16x512xf32>
    %c0_12 = arith.constant 0 : index
    %c0_13 = arith.constant 0 : index
    %18 = vector.load %arg3[%c0_12, %c0_13] : memref<1x512xf32, #tpu.memory_space<vmem>>, vector<1x512xf32>
    %19 = vector.broadcast %18 : vector<1x512xf32> to vector<16x512xf32>
    %20 = arith.addf %17, %19 : vector<16x512xf32>
    %cst_14 = arith.constant 0.000000e+00 : f32
    %21 = vector.broadcast %cst_14 : f32 to vector<16x512xf32>
    %22 = arith.maximumf %20, %21 : vector<16x512xf32>
    %23 = arith.truncf %22 : vector<16x512xf32> to vector<16x512xbf16>
    %c0_15 = arith.constant 0 : index
    %c0_16 = arith.constant 0 : index
    %24 = vector.load %arg4[%c0_15, %c0_16] : memref<512x256xbf16, #tpu.memory_space<vmem>>, vector<512x256xbf16>
    %cst_17 = arith.constant dense<0.000000e+00> : vector<16x256xf32>
    %25 = tpu.matmul %23, %24, %cst_17 {dimension_numbers = #tpu.dot_dimension_numbers<[1], [0], [0], [1], [0, 0, 1, 1], [], []>} : vector<16x512xbf16>, vector<512x256xbf16>, vector<16x256xf32> -> vector<16x256xf32>
    %c0_18 = arith.constant 0 : index
    %c0_19 = arith.constant 0 : index
    %26 = vector.load %arg5[%c0_18, %c0_19] : memref<1x256xf32, #tpu.memory_space<vmem>>, vector<1x256xf32>
    %27 = vector.broadcast %26 : vector<1x256xf32> to vector<16x256xf32>
    %28 = arith.addf %25, %27 : vector<16x256xf32>
    %c0_20 = arith.constant 0 : index
    %c0_21 = arith.constant 0 : index
    %c0_22 = arith.constant 0 : index
    %29 = vector.load %arg6[%c0_20, %c0_21, %c0_22] : memref<1x16x256xf32, #tpu.memory_space<vmem>>, vector<1x16x256xf32>
    %30 = vector.shape_cast %29 : vector<1x16x256xf32> to vector<16x256xf32>
    %31 = vector.shape_cast %28 : vector<16x256xf32> to vector<1x16x256xf32>
    tpu.vector_store %arg6[%c0_20, %c0_21, %c0_22], %31 {strides = array<i32>} : memref<1x16x256xf32, #tpu.memory_space<vmem>>, vector<1x16x256xf32>,
    return
  }
  func.func @transform_0(%arg0: i32) -> (i32, i32, i32) {
    %c0_i32 = arith.constant 0 : i32
    %c0_i32_0 = arith.constant 0 : i32
    %c0_i32_1 = arith.constant 0 : i32
    return %arg0, %c0_i32, %c0_i32_0 : i32, i32, i32
  }
  func.func @transform_1(%arg0: i32) -> (i32, i32, i32) {
    %c0_i32 = arith.constant 0 : i32
    %c0_i32_0 = arith.constant 0 : i32
    %c0_i32_1 = arith.constant 0 : i32
    %c0_i32_2 = arith.constant 0 : i32
    return %c0_i32, %c0_i32_0, %c0_i32_1 : i32, i32, i32
  }
  func.func @transform_2(%arg0: i32) -> (i32, i32) {
    %c0_i32 = arith.constant 0 : i32
    %c0_i32_0 = arith.constant 0 : i32
    %c0_i32_1 = arith.constant 0 : i32
    return %c0_i32, %c0_i32_0 : i32, i32
  }
  func.func @transform_3(%arg0: i32) -> (i32, i32) {
    %c0_i32 = arith.constant 0 : i32
    %c0_i32_0 = arith.constant 0 : i32
    %c0_i32_1 = arith.constant 0 : i32
    return %c0_i32, %c0_i32_0 : i32, i32
  }
  func.func @transform_4(%arg0: i32) -> (i32, i32) {
    %c0_i32 = arith.constant 0 : i32
    %c0_i32_0 = arith.constant 0 : i32
    %c0_i32_1 = arith.constant 0 : i32
    return %c0_i32, %c0_i32_0 : i32, i32
  }
  func.func @transform_5(%arg0: i32) -> (i32, i32, i32) {
    %c0_i32 = arith.constant 0 : i32
    %c0_i32_0 = arith.constant 0 : i32
    %c0_i32_1 = arith.constant 0 : i32
    return %arg0, %c0_i32, %c0_i32_0 : i32, i32, i32
  }
}

</mosaic_0001>

<llo_original>
// kernel: _people_flow_forward.1
$region0: #{_people_flow_forward.1}
  #allocation0 [shape = 'u32[]', space=smem, size = 0x4, offset = 0x4, fixed_abs, tag = 'smem constant byte address 0x4 - core index']
  #allocation1 [shape = 'u32[144,128]{1,0:T(1,128)}', space=vmem, size = 0x12000, scoped, tag = 'internal scratch']
  %s0 = inlined_call_operand.vmem [shape: bf16[2,18,72], index: 0, kind: input, shape index: {}]
  %s1 = inlined_call_operand.hbm [shape: bf16[3,72,512], index: 1, kind: input, shape index: {}]
  %s2 = inlined_call_operand.vmem [shape: f32[1,512], index: 2, kind: input, shape index: {}]
  %s3 = inlined_call_operand.vmem [shape: bf16[512,256], index: 3, kind: input, shape index: {}]
  %s4 = inlined_call_operand.vmem [shape: f32[1,256], index: 4, kind: input, shape index: {}]
  %s5 = inlined_call_operand.vmem [shape: f32[2,16,256], index: 5, kind: output, shape index: {}]
  %s6 = sld [smem:[#allocation0]]
  $region57: #{_people_flow_forward.1} parent=0
    _
  %s8 = ssub.s32 1, %s6
  %s9 = scalar_select 0, %s8, %s6
  $region1: #{_people_flow_forward.1} parent=0
    #allocation2 [shape = 'u8[221184]{0}', space=vmem, size = 0x36000, scoped, tag = 'input window, operand 1, single buffered']
    #allocation3 [shape = 's32[2]{0}', space=sflag, size = 0x8, scoped, tag = 'scoped memory for _people_flow_forward.1']
    %10 = vsyncpa [#allocation3], 0
    loop: start=0, step=1, limit=4
    $region2: #{_people_flow_forward.1} parent=1 // loop_pre_header
      _
    $region3: #{_people_flow_forward.1} parent=1 // loop_header
      %s12 = sphi 0, %s16
      %p13 = scmp.ge.s32.totalorder %s12, 4
      %s22 = sphi 0, %s24
      %s25 = sphi 0, %s22
      %s26 = sphi 0, %s25
      %s42 = sphi 0, %s26
      %s46 = sphi 0, %s46
      %s48 = sphi 0, %s46
      %s49 = sphi 0, %s48
      %s63 = sphi 0, %s49
      %s67 = sphi 0, %s67
      %s69 = sphi 0, %s67
      %s70 = sphi 0, %s69
      %s84 = sphi 0, %s70
      %s88 = sphi 0, %s88
      %s90 = sphi 0, %s88
      %s91 = sphi 0, %s90
      %s105 = sphi 0, %s91
      %s109 = sphi 0, %s109
      %s111 = sphi 0, %s109
      %s112 = sphi 0, %s111
      %s126 = sphi 0, %s112
      %s132 = sphi 0, %s134
      %s135 = sphi 0, %s132
      %s136 = sphi 0, %s135
      %s152 = sphi 0, %s136
    $region4: #{_people_flow_forward.1} parent=1 // loop_header_branch
      %15 = sbr.rel (%p13) target = $region8
    $region5: #{_people_flow_forward.1} parent=1 // loop_body
      %s17 = ssub.s32 %s12, 1
      %s18 = ssub.s32 %s12, 2
      %s19 = sadd.s32 %s12, 1
      %s20 = ssub.s32 %s12, %s19
      %p21 = scmp.eq.s32.totalorder %s20, 0
      %s23 = sadd.s32 %s22, 1
      %s24 = scalar_select %p21, %s22, %s23
      %p27 = pneg %p21
      %p28 = scmp.eq.s32.totalorder %s12, 1
      %p29 = por %p27, %p28
      %p30 = scmp.ne.s32.totalorder %s22, %s25
      %p31 = scmp.eq.s32.totalorder %s12, 0
      %p32 = por %p30, %p31
      %p33 = scmp.ne.s32.totalorder %s22, %s25
      %p34 = scmp.eq.s32.totalorder %s17, 1
      %p35 = por %p33, %p34
      %p36 = scmp.ne.s32.totalorder %s25, %s26
      %p37 = scmp.eq.s32.totalorder %s17, 0
      %p38 = por %p36, %p37
      %p39 = scmp.ne.s32.totalorder %s25, %s26
      %p40 = scmp.eq.s32.totalorder %s18, 1
      %p41 = por %p39, %p40
      %p43 = scmp.ne.s32.totalorder %s26, %s42
      %p44 = scmp.eq.s32.totalorder %s18, 0
      %p45 = por %p43, %p44
      %s47 = sadd.s32 %s46, 1
      %p50 = scmp.eq.s32.totalorder %s12, 1
      %p51 = scmp.ne.s32.totalorder %s46, %s48
      %p52 = scmp.eq.s32.totalorder %s12, 0
      %p53 = por %p51, %p52
      %p54 = scmp.ne.s32.totalorder %s46, %s48
      %p55 = scmp.eq.s32.totalorder %s17, 1
      %p56 = por %p54, %p55
      %p57 = scmp.ne.s32.totalorder %s48, %s49
      %p58 = scmp.eq.s32.totalorder %s17, 0
      %p59 = por %p57, %p58
      %p60 = scmp.ne.s32.totalorder %s48, %s49
      %p61 = scmp.eq.s32.totalorder %s18, 1
      %p62 = por %p60, %p61
      %p64 = scmp.ne.s32.totalorder %s49, %s63
      %p65 = scmp.eq.s32.totalorder %s18, 0
      %p66 = por %p64, %p65
      %s68 = sadd.s32 %s67, 1
      %p71 = scmp.eq.s32.totalorder %s12, 1
      %p72 = scmp.ne.s32.totalorder %s67, %s69
      %p73 = scmp.eq.s32.totalorder %s12, 0
      %p74 = por %p72, %p73
      %p75 = scmp.ne.s32.totalorder %s67, %s69
      %p76 = scmp.eq.s32.totalorder %s17, 1
      %p77 = por %p75, %p76
      %p78 = scmp.ne.s32.totalorder %s69, %s70
      %p79 = scmp.eq.s32.totalorder %s17, 0
      %p80 = por %p78, %p79
      %p81 = scmp.ne.s32.totalorder %s69, %s70
      %p82 = scmp.eq.s32.totalorder %s18, 1
      %p83 = por %p81, %p82
      %p85 = scmp.ne.s32.totalorder %s70, %s84
      %p86 = scmp.eq.s32.totalorder %s18, 0
      %p87 = por %p85, %p86
      %s89 = sadd.s32 %s88, 1
      %p92 = scmp.eq.s32.totalorder %s12, 1
      %p93 = scmp.ne.s32.totalorder %s88, %s90
      %p94 = scmp.eq.s32.totalorder %s12, 0
      %p95 = por %p93, %p94
      %p96 = scmp.ne.s32.totalorder %s88, %s90
      %p97 = scmp.eq.s32.totalorder %s17, 1
      %p98 = por %p96, %p97
      %p99 = scmp.ne.s32.totalorder %s90, %s91
      %p100 = scmp.eq.s32.totalorder %s17, 0
      %p101 = por %p99, %p100
      %p102 = scmp.ne.s32.totalorder %s90, %s91
      %p103 = scmp.eq.s32.totalorder %s18, 1
      %p104 = por %p102, %p103
      %p106 = scmp.ne.s32.totalorder %s91, %s105
      %p107 = scmp.eq.s32.totalorder %s18, 0
      %p108 = por %p106, %p107
      %s110 = sadd.s32 %s109, 1
      %p113 = scmp.eq.s32.totalorder %s12, 1
      %p114 = scmp.ne.s32.totalorder %s109, %s111
      %p115 = scmp.eq.s32.totalorder %s12, 0
      %p116 = por %p114, %p115
      %p117 = scmp.ne.s32.totalorder %s109, %s111
      %p118 = scmp.eq.s32.totalorder %s17, 1
      %p119 = por %p117, %p118
      %p120 = scmp.ne.s32.totalorder %s111, %s112
      %p121 = scmp.eq.s32.totalorder %s17, 0
      %p122 = por %p120, %p121
      %p123 = scmp.ne.s32.totalorder %s111, %s112
      %p124 = scmp.eq.s32.totalorder %s18, 1
      %p125 = por %p123, %p124
      %p127 = scmp.ne.s32.totalorder %s112, %s126
      %p128 = scmp.eq.s32.totalorder %s18, 0
      %p129 = por %p127, %p128
      %s130 = ssub.s32 %s12, %s19
      %p131 = scmp.eq.s32.totalorder %s130, 0
      %s133 = sadd.s32 %s132, 1
      %s134 = scalar_select %p131, %s132, %s133
      %p137 = pneg %p131
      %p138 = scmp.eq.s32.totalorder %s12, 1
      %p139 = por %p137, %p138
      %p140 = scmp.ne.s32.totalorder %s132, %s135
      %p141 = scmp.eq.s32.totalorder %s12, 0
      %p142 = por %p140, %p141
      %p143 = scmp.ne.s32.totalorder %s132, %s135
      %p144 = scmp.eq.s32.totalorder %s17, 1
      %p145 = por %p143, %p144
      %p146 = scmp.ne.s32.totalorder %s135, %s136
      %p147 = scmp.eq.s32.totalorder %s17, 0
      %p148 = por %p146, %p147
      %p149 = scmp.ne.s32.totalorder %s135, %s136
      %p150 = scmp.eq.s32.totalorder %s18, 1
      %p151 = por %p149, %p150
      %p153 = scmp.ne.s32.totalorder %s136, %s152
      %p154 = scmp.eq.s32.totalorder %s18, 0
      %p155 = por %p153, %p154
      %p156 = scmp.le.s32.totalorder 1, %s12
      %p157 = scmp.lt.s32.totalorder %s12, 3
      %p158 = pnand %p156, %p157
      %p159 = pneg %p158
      // Predicated region
      $region9: #{_people_flow_forward.1} parent=5 // pred_check
        _
      $region10: #{_people_flow_forward.1} parent=5 // pred_check_branch
        %161 = sbr.rel (%p158) target = $region12
      $region11: #{_people_flow_forward.1} parent=5 // pred_region
        %s162 = ssub.s32 %s12, 1
        // Predicated region
        $region13: #{_people_flow_forward.1} parent=11 // pred_check
          %p163 = pneg %p59
        $region14: #{_people_flow_forward.1} parent=11 // pred_check_branch
          %165 = sbr.rel (%p163) target = $region16
        $region15: #{_people_flow_forward.1} parent=11 // pred_region
          %s167 = ssub.s32 6912, 6912
          %168 = vsyncadd [#allocation3], %s167
          %s169 = sshll.u32 [#allocation2], 4
          %s170 = int_to_ptr.vmem [resolvable:$true] %s169
          %175 = dma.hbm_to_vmem [thread:$0]  %s1, 6912, %s170, [#allocation3], 256, 256, 16
        $region16: #{_people_flow_forward.1} parent=11 // pred_fallthru
          _
        // Predicated region
        $region17: #{_people_flow_forward.1} parent=11 // pred_check
          %p176 = pneg %p80
        $region18: #{_people_flow_forward.1} parent=11 // pred_check_branch
          %178 = sbr.rel (%p176) target = $region20
        $region19: #{_people_flow_forward.1} parent=11 // pred_region
          _
        $region20: #{_people_flow_forward.1} parent=11 // pred_fallthru
          _
        // Predicated region
        $region21: #{_people_flow_forward.1} parent=11 // pred_check
          %p179 = pneg %p101
        $region22: #{_people_flow_forward.1} parent=11 // pred_check_branch
          %181 = sbr.rel (%p179) target = $region24
        $region23: #{_people_flow_forward.1} parent=11 // pred_region
          _
        $region24: #{_people_flow_forward.1} parent=11 // pred_fallthru
          _
        // Predicated region
        $region25: #{_people_flow_forward.1} parent=11 // pred_check
          %p182 = pneg %p122
        $region26: #{_people_flow_forward.1} parent=11 // pred_check_branch
          %184 = sbr.rel (%p182) target = $region28
        $region27: #{_people_flow_forward.1} parent=11 // pred_region
          _
        $region28: #{_people_flow_forward.1} parent=11 // pred_fallthru
          _
      $region12: #{_people_flow_forward.1} parent=5 // pred_fallthru
        _
      %p185 = scmp.lt.s32.totalorder %s12, 2
      // Predicated region
      $region29: #{_people_flow_forward.1} parent=5 // pred_check
        %p186 = pneg %p185
      $region30: #{_people_flow_forward.1} parent=5 // pred_check_branch
        %188 = sbr.rel (%p186) target = $region32
      $region31: #{_people_flow_forward.1} parent=5 // pred_region
        // Predicated region
        $region33: #{_people_flow_forward.1} parent=31 // pred_check
          %p189 = pneg %p32
        $region34: #{_people_flow_forward.1} parent=31 // pred_check_branch
          %191 = sbr.rel (%p189) target = $region36
        $region35: #{_people_flow_forward.1} parent=31 // pred_region
          %p192 = scmp.lt.s32.totalorder %s12, 1
          %s193 = scalar_select %p192, %s12, 1
          %s194 = smul.addr %s193, 3
          %s195 = smul.addr %s194, 4
          %s196 = scalar_lea.vmem %s0, %s195
        $region36: #{_people_flow_forward.1} parent=31 // pred_fallthru
          _
      $region32: #{_people_flow_forward.1} parent=5 // pred_fallthru
        _
      %p197 = scmp.le.s32.totalorder 1, %s12
      %p198 = scmp.lt.s32.totalorder %s12, 3
      %p199 = pnand %p197, %p198
      %p200 = pneg %p199
      // Predicated region
      $region37: #{_people_flow_forward.1} parent=5 // pred_check
        _
      $region38: #{_people_flow_forward.1} parent=5 // pred_check_branch
        %202 = sbr.rel (%p199) target = $region40
      $region39: #{_people_flow_forward.1} parent=5 // pred_region
        %s203 = ssub.s32 %s12, 1
        // Predicated region
        $region41: #{_people_flow_forward.1} parent=39 // pred_check
          %p204 = pneg %p59
        $region42: #{_people_flow_forward.1} parent=39 // pred_check_branch
          %206 = sbr.rel (%p204) target = $region44
        $region43: #{_people_flow_forward.1} parent=39 // pred_region
          %207 = dma.done [#allocation3], 6912
        $region44: #{_people_flow_forward.1} parent=39 // pred_fallthru
          _
        %p208 = scmp.lt.s32.totalorder %s17, 1
        %s209 = scalar_select %p208, %s17, 1
        %s210 = smul.addr %s209, 3
        %s211 = smul.addr %s210, 4
        %s212 = scalar_lea.vmem %s0, %s211
        %p213 = pneg %p38
        %p214 = pneg %p35
        %p215 = pneg %p59
        %p216 = pneg %p56
        %p217 = pneg %p80
        %p218 = pneg %p77
        %p219 = pneg %p101
        %p220 = pneg %p98
        %p221 = pneg %p122
        %p222 = pneg %p119
        %p223 = pneg %p148
        %p224 = pneg %p145
        %p225 = scmp.lt.s32.totalorder %s17, 1
        %s226 = scalar_select %p225, %s17, 1
        %s227 = smul.addr %s226, 4
        %s228 = smul.addr %s227, 8
        %s229 = scalar_lea.vmem %s5, %s228
        %p230 = scmp.lt.s32.totalorder %s17, 1
        %s231 = scalar_select %p230, %s17, 1
        %s232 = smul.addr %s231, 3
        %s233 = smul.addr %s232, 4
        %s234 = scalar_lea.vmem %s0, %s233
        %p235 = scmp.lt.s32.totalorder %s17, 1
        %s236 = scalar_select %p235, %s17, 1
        %s237 = smul.addr %s236, 4
        %s238 = smul.addr %s237, 8
        %s239 = scalar_lea.vmem %s5, %s238
        %v241 = vld [vmem:[%s234] sm:$0xf]
        %v242 = vld [vmem:[%s234 + $0x4] sm:$0xf]
        %v243 = vld [vmem:[%s234 + $0x8] sm:$0x1]
        %v244 = vld [vmem:[#allocation2] sm:$0xff]
        %v245 = vld [vmem:[#allocation2 + $0x8] sm:$0xff]
        %v246 = vld [vmem:[#allocation2 + $0x10] sm:$0xff]
        %v247 = vld [vmem:[#allocation2 + $0x18] sm:$0xff]
        %v248 = vld [vmem:[#allocation2 + $0x20] sm:$0xff]
        %v249 = vld [vmem:[#allocation2 + $0x28] sm:$0xff]
        %v250 = vld [vmem:[#allocation2 + $0x30] sm:$0xff]
        %v251 = vld [vmem:[#allocation2 + $0x38] sm:$0xff]
        %v252 = vld [vmem:[#allocation2 + $0x40] sm:$0xff]
        %v253 = vld [vmem:[#allocation2 + $0x48] sm:$0xff]
        %v254 = vld [vmem:[#allocation2 + $0x50] sm:$0xff]
        %v255 = vld [vmem:[#allocation2 + $0x58] sm:$0xff]
        %v256 = vld [vmem:[#allocation2 + $0x60] sm:$0xff]
        %v257 = vld [vmem:[#allocation2 + $0x68] sm:$0xff]
        %v258 = vld [vmem:[#allocation2 + $0x70] sm:$0xff]
        %v259 = vld [vmem:[#allocation2 + $0x78] sm:$0xff]
        %v260 = vld [vmem:[#allocation2 + $0x80] sm:$0xff]
        %v261 = vld [vmem:[#allocation2 + $0x88] sm:$0xff]
        %s262 = scalar_lea.vmem [#allocation2], 144
        %v263 = vld [vmem:[%s262] sm:$0xff]
        %v264 = vld [vmem:[%s262 + $0x8] sm:$0xff]
        %v265 = vld [vmem:[%s262 + $0x10] sm:$0xff]
        %v266 = vld [vmem:[%s262 + $0x18] sm:$0xff]
        %v267 = vld [vmem:[%s262 + $0x20] sm:$0xff]
        %v268 = vld [vmem:[%s262 + $0x28] sm:$0xff]
        %v269 = vld [vmem:[%s262 + $0x30] sm:$0xff]
        %v270 = vld [vmem:[%s262 + $0x38] sm:$0xff]
        %v271 = vld [vmem:[%s262 + $0x40] sm:$0xff]
        %v272 = vld [vmem:[%s262 + $0x48] sm:$0xff]
        %v273 = vld [vmem:[%s262 + $0x50] sm:$0xff]
        %v274 = vld [vmem:[%s262 + $0x58] sm:$0xff]
        %v275 = vld [vmem:[%s262 + $0x60] sm:$0xff]
        %v276 = vld [vmem:[%s262 + $0x68] sm:$0xff]
        %v277 = vld [vmem:[%s262 + $0x70] sm:$0xff]
        %v278 = vld [vmem:[%s262 + $0x78] sm:$0xff]
        %v279 = vld [vmem:[%s262 + $0x80] sm:$0xff]
        %v280 = vld [vmem:[%s262 + $0x88] sm:$0xff]
        %v284 = vunpack.c.l.b16 %v241
        %v285 = vunpack.c.l.b16 %v242
        %v286 = vunpack.c.l.b16 %v243
        %v287 = vpack.c.b16 %v285, %v284
        %v288 = vpack.c.b16 %v286, %v286
        %vm289 = vsmask.f32 7424
        %v291 = vshrl.u32 %v287, 16
        %v293 = vshll.u32 %v287, 16
        %v295 = vrot.slane %v293, 1
        %v296 = vor.u32 %v291, %v295
        %v298 = vshll.u32 %v288, 16
        %v300 = vrot.slane %v298, 1
        %v301 = vsel %vm289, %v296, %v300
        %v320 = vunpack.c.l.b16 %v263
        %v321 = vunpack.c.h.b16 %v263
        %v322 = vunpack.c.l.b16 %v264
        %v323 = vunpack.c.h.b16 %v264
        %v324 = vunpack.c.l.b16 %v265
        %v325 = vunpack.c.h.b16 %v265
        %v326 = vunpack.c.l.b16 %v266
        %v327 = vunpack.c.h.b16 %v266
        %v328 = vunpack.c.l.b16 %v267
        %v329 = vunpack.c.h.b16 %v267
        %v330 = vunpack.c.l.b16 %v268
        %v331 = vunpack.c.h.b16 %v268
        %v332 = vunpack.c.l.b16 %v269
        %v333 = vunpack.c.h.b16 %v269
        %v334 = vunpack.c.l.b16 %v270
        %v335 = vunpack.c.h.b16 %v270
        %v336 = vunpack.c.l.b16 %v271
        %v337 = vunpack.c.h.b16 %v271
        %v338 = vunpack.c.l.b16 %v272
        %v339 = vunpack.c.h.b16 %v272
        %v340 = vunpack.c.l.b16 %v273
        %v341 = vunpack.c.h.b16 %v273
        %v342 = vunpack.c.l.b16 %v274
        %v343 = vunpack.c.h.b16 %v274
        %v344 = vunpack.c.l.b16 %v275
        %v345 = vunpack.c.h.b16 %v275
        %v346 = vunpack.c.l.b16 %v276
        %v347 = vunpack.c.h.b16 %v276
        %v348 = vunpack.c.l.b16 %v277
        %v349 = vunpack.c.h.b16 %v277
        %v350 = vunpack.c.l.b16 %v278
        %v351 = vunpack.c.h.b16 %v278
        %v352 = vunpack.c.l.b16 %v279
        %v353 = vunpack.c.h.b16 %v279
        %v354 = vunpack.c.l.b16 %v280
        %v355 = vunpack.c.h.b16 %v280
        %v356 = vpack.c.b16 %v324, %v320
        %v357 = vpack.c.b16 %v325, %v321
        %v358 = vpack.c.b16 %v326, %v322
        %v359 = vpack.c.b16 %v327, %v323
        %v360 = vpack.c.b16 %v332, %v328
        %v361 = vpack.c.b16 %v333, %v329
        %v362 = vpack.c.b16 %v334, %v330
        %v363 = vpack.c.b16 %v335, %v331
        %v364 = vpack.c.b16 %v340, %v336
        %v365 = vpack.c.b16 %v341, %v337
        %v366 = vpack.c.b16 %v342, %v338
        %v367 = vpack.c.b16 %v343, %v339
        %v368 = vpack.c.b16 %v348, %v344
        %v369 = vpack.c.b16 %v349, %v345
        %v370 = vpack.c.b16 %v350, %v346
        %v371 = vpack.c.b16 %v351, %v347
        %v372 = vpack.c.b16 %v352, %v352
        %v373 = vpack.c.b16 %v353, %v353
        %v374 = vpack.c.b16 %v354, %v354
        %v375 = vpack.c.b16 %v355, %v355
        %vm392 = vcmask 588800
        %v394 = vsel %vm392, %v301, 0
        %vm396 = vcmask 1043456
        %v398 = vsel %vm396, %v372, 0
        %v401 = vsel %vm396, %v373, 0
        %v404 = vsel %vm396, %v374, 0
        %v407 = vsel %vm396, %v375, 0
        %409 = vmatprep.subr.bf16.mxu0 %v357
        %410 = vmatpush1.bf16.msra.mxu0 %v356
        %411 = vmatprep.subr.bf16.mxu0 %v361
        %412 = vmatpush1.bf16.msra.mxu0 %v360
        %413 = vmatprep.subr.bf16.mxu0 %v365
        %414 = vmatpush1.bf16.msra.mxu0 %v364
        %415 = vmatprep.subr.bf16.mxu0 %v369
        %416 = vmatpush1.bf16.msra.mxu0 %v368
        %417 = vmatprep.subr.bf16.mxu0 %v401
        %418 = vmatpush1.bf16.msra.mxu0 %v398
        %419 = vmatprep.subr.bf16.mxu0 0
        %420 = vmatpush1.bf16.msra.mxu0 0
        %421 = vmatprep.subr.bf16.mxu0 0
        %422 = vmatpush1.bf16.msra.mxu0 0
        %423 = vmatprep.subr.bf16.mxu0 0
        %424 = vmatpush1.bf16.msra.mxu0 0
        %425 = vmatprep.subr.bf16.mxu0 0
        %426 = vmatpush1.bf16.msra.mxu0 0
        %427 = vmatprep.subr.bf16.mxu0 0
        %428 = vmatpush1.bf16.msra.mxu0 0
        %429 = vmatprep.subr.bf16.mxu0 0
        %430 = vmatpush1.bf16.msra.mxu0 0
        %431 = vmatprep.subr.bf16.mxu0 0
        %432 = vmatpush1.bf16.msra.mxu0 0
        %433 = vmatprep.subr.bf16.mxu0 0
        %434 = vmatpush1.bf16.msra.mxu0 0
        %435 = vmatprep.subr.bf16.mxu0 0
        %436 = vmatpush1.bf16.msra.mxu0 0
        %437 = vmatprep.subr.bf16.mxu0 0
        %438 = vmatpush1.bf16.msra.mxu0 0
        %439 = vmatprep.subr.bf16.mxu0 0
        %440 = vmatpush1.bf16.msra.mxu0 0
        %441 = vmatprep.mubr.bf16.mxu0 0
        %442 = vmatmul.mubr.bf16.gmra.mrb[0].mxu0 %v394
        %v443 = vpop.f32.mrb[0].mxu0
        %v444 = vadd.f32 0.0, %v443
        %v445 = vpop.f32.mrb[0].mxu0
        %v446 = vadd.f32 0.0, %v445
        %v447 = vpop.f32.mrb[0].mxu0
        %v448 = vadd.f32 0.0, %v447
        %v449 = vpop.f32.mrb[0].mxu0
        %v450 = vadd.f32 0.0, %v449
        %451 = vdwg.mxu0
        %452 = vmatprep.subr.bf16.mxu0 %v359
        %453 = vmatpush1.bf16.msra.mxu0 %v358
        %454 = vmatprep.subr.bf16.mxu0 %v363
        %455 = vmatpush1.bf16.msra.mxu0 %v362
        %456 = vmatprep.subr.bf16.mxu0 %v367
        %457 = vmatpush1.bf16.msra.mxu0 %v366
        %458 = vmatprep.subr.bf16.mxu0 %v371
        %459 = vmatpush1.bf16.msra.mxu0 %v370
        %460 = vmatprep.subr.bf16.mxu0 %v407
        %461 = vmatpush1.bf16.msra.mxu0 %v404
        %462 = vmatprep.subr.bf16.mxu0 0
        %463 = vmatpush1.bf16.msra.mxu0 0
        %464 = vmatprep.subr.bf16.mxu0 0
        %465 = vmatpush1.bf16.msra.mxu0 0
        %466 = vmatprep.subr.bf16.mxu0 0
        %467 = vmatpush1.bf16.msra.mxu0 0
        %468 = vmatprep.subr.bf16.mxu0 0
        %469 = vmatpush1.bf16.msra.mxu0 0
        %470 = vmatprep.subr.bf16.mxu0 0
        %471 = vmatpush1.bf16.msra.mxu0 0
        %472 = vmatprep.subr.bf16.mxu0 0
        %473 = vmatpush1.bf16.msra.mxu0 0
        %474 = vmatprep.subr.bf16.mxu0 0
        %475 = vmatpush1.bf16.msra.mxu0 0
        %476 = vmatprep.subr.bf16.mxu0 0
        %477 = vmatpush1.bf16.msra.mxu0 0
        %478 = vmatprep.subr.bf16.mxu0 0
        %479 = vmatpush1.bf16.msra.mxu0 0
        %480 = vmatprep.subr.bf16.mxu0 0
        %481 = vmatpush1.bf16.msra.mxu0 0
        %482 = vmatprep.subr.bf16.mxu0 0
        %483 = vmatpush1.bf16.msra.mxu0 0
        %484 = vmatprep.mubr.bf16.mxu0 0
        %485 = vmatmul.mubr.bf16.gmra.mrb[0].mxu0 %v394
        %v486 = vpop.f32.mrb[0].mxu0
        %v487 = vadd.f32 0.0, %v486
        %v488 = vpop.f32.mrb[0].mxu0
        %v489 = vadd.f32 0.0, %v488
        %v490 = vpop.f32.mrb[0].mxu0
        %v491 = vadd.f32 0.0, %v490
        %v492 = vpop.f32.mrb[0].mxu0
        %v493 = vadd.f32 0.0, %v492
        %494 = vdwg.mxu0
        %v513 = vunpack.c.l.b16 %v244
        %v514 = vunpack.c.h.b16 %v244
        %v515 = vunpack.c.l.b16 %v245
        %v516 = vunpack.c.h.b16 %v245
        %v517 = vunpack.c.l.b16 %v246
        %v518 = vunpack.c.h.b16 %v246
        %v519 = vunpack.c.l.b16 %v247
        %v520 = vunpack.c.h.b16 %v247
        %v521 = vunpack.c.l.b16 %v248
        %v522 = vunpack.c.h.b16 %v248
        %v523 = vunpack.c.l.b16 %v249
        %v524 = vunpack.c.h.b16 %v249
        %v525 = vunpack.c.l.b16 %v250
        %v526 = vunpack.c.h.b16 %v250
        %v527 = vunpack.c.l.b16 %v251
        %v528 = vunpack.c.h.b16 %v251
        %v529 = vunpack.c.l.b16 %v252
        %v530 = vunpack.c.h.b16 %v252
        %v531 = vunpack.c.l.b16 %v253
        %v532 = vunpack.c.h.b16 %v253
        %v533 = vunpack.c.l.b16 %v254
        %v534 = vunpack.c.h.b16 %v254
        %v535 = vunpack.c.l.b16 %v255
        %v536 = vunpack.c.h.b16 %v255
        %v537 = vunpack.c.l.b16 %v256
        %v538 = vunpack.c.h.b16 %v256
        %v539 = vunpack.c.l.b16 %v257
        %v540 = vunpack.c.h.b16 %v257
        %v541 = vunpack.c.l.b16 %v258
        %v542 = vunpack.c.h.b16 %v258
        %v543 = vunpack.c.l.b16 %v259
        %v544 = vunpack.c.h.b16 %v259
        %v545 = vunpack.c.l.b16 %v260
        %v546 = vunpack.c.h.b16 %v260
        %v547 = vunpack.c.l.b16 %v261
        %v548 = vunpack.c.h.b16 %v261
        %v549 = vpack.c.b16 %v517, %v513
        %v550 = vpack.c.b16 %v518, %v514
        %v551 = vpack.c.b16 %v519, %v515
        %v552 = vpack.c.b16 %v520, %v516
        %v553 = vpack.c.b16 %v525, %v521
        %v554 = vpack.c.b16 %v526, %v522
        %v555 = vpack.c.b16 %v527, %v523
        %v556 = vpack.c.b16 %v528, %v524
        %v557 = vpack.c.b16 %v533, %v529
        %v558 = vpack.c.b16 %v534, %v530
        %v559 = vpack.c.b16 %v535, %v531
        %v560 = vpack.c.b16 %v536, %v532
        %v561 = vpack.c.b16 %v541, %v537
        %v562 = vpack.c.b16 %v542, %v538
        %v563 = vpack.c.b16 %v543, %v539
        %v564 = vpack.c.b16 %v544, %v540
        %v565 = vpack.c.b16 %v545, %v545
        %v566 = vpack.c.b16 %v546, %v546
        %v567 = vpack.c.b16 %v547, %v547
        %v568 = vpack.c.b16 %v548, %v548
        %v585 = vsel %vm392, %v287, 0
        %v588 = vsel %vm396, %v565, 0
        %v591 = vsel %vm396, %v566, 0
        %v594 = vsel %vm396, %v567, 0
        %v597 = vsel %vm396, %v568, 0
        %599 = vmatprep.subr.bf16.mxu0 %v550
        %600 = vmatpush1.bf16.msra.mxu0 %v549
        %601 = vmatprep.subr.bf16.mxu0 %v554
        %602 = vmatpush1.bf16.msra.mxu0 %v553
        %603 = vmatprep.subr.bf16.mxu0 %v558
        %604 = vmatpush1.bf16.msra.mxu0 %v557
        %605 = vmatprep.subr.bf16.mxu0 %v562
        %606 = vmatpush1.bf16.msra.mxu0 %v561
        %607 = vmatprep.subr.bf16.mxu0 %v591
        %608 = vmatpush1.bf16.msra.mxu0 %v588
        %609 = vmatprep.subr.bf16.mxu0 0
        %610 = vmatpush1.bf16.msra.mxu0 0
        %611 = vmatprep.subr.bf16.mxu0 0
        %612 = vmatpush1.bf16.msra.mxu0 0
        %613 = vmatprep.subr.bf16.mxu0 0
        %614 = vmatpush1.bf16.msra.mxu0 0
        %615 = vmatprep.subr.bf16.mxu0 0
        %616 = vmatpush1.bf16.msra.mxu0 0
        %617 = vmatprep.subr.bf16.mxu0 0
        %618 = vmatpush1.bf16.msra.mxu0 0
        %619 = vmatprep.subr.bf16.mxu0 0
        %620 = vmatpush1.bf16.msra.mxu0 0
        %621 = vmatprep.subr.bf16.mxu0 0
        %622 = vmatpush1.bf16.msra.mxu0 0
        %623 = vmatprep.subr.bf16.mxu0 0
        %624 = vmatpush1.bf16.msra.mxu0 0
        %625 = vmatprep.subr.bf16.mxu0 0
        %626 = vmatpush1.bf16.msra.mxu0 0
        %627 = vmatprep.subr.bf16.mxu0 0
        %628 = vmatpush1.bf16.msra.mxu0 0
        %629 = vmatprep.subr.bf16.mxu0 0
        %630 = vmatpush1.bf16.msra.mxu0 0
        %631 = vmatprep.mubr.bf16.mxu0 0
        %632 = vmatmul.mubr.bf16.gmra.mrb[0].mxu0 %v585
        %v633 = vpop.f32.mrb[0].mxu0
        %v634 = vadd.f32 %v444, %v633
        %v635 = vpop.f32.mrb[0].mxu0
        %v636 = vadd.f32 %v446, %v635
        %v637 = vpop.f32.mrb[0].mxu0
        %v638 = vadd.f32 %v448, %v637
        %v639 = vpop.f32.mrb[0].mxu0
        %v640 = vadd.f32 %v450, %v639
        %641 = vdwg.mxu0
        %642 = vmatprep.subr.bf16.mxu0 %v552
        %643 = vmatpush1.bf16.msra.mxu0 %v551
        %644 = vmatprep.subr.bf16.mxu0 %v556
        %645 = vmatpush1.bf16.msra.mxu0 %v555
        %646 = vmatprep.subr.bf16.mxu0 %v560
        %647 = vmatpush1.bf16.msra.mxu0 %v559
        %648 = vmatprep.subr.bf16.mxu0 %v564
        %649 = vmatpush1.bf16.msra.mxu0 %v563
        %650 = vmatprep.subr.bf16.mxu0 %v597
        %651 = vmatpush1.bf16.msra.mxu0 %v594
        %652 = vmatprep.subr.bf16.mxu0 0
        %653 = vmatpush1.bf16.msra.mxu0 0
        %654 = vmatprep.subr.bf16.mxu0 0
        %655 = vmatpush1.bf16.msra.mxu0 0
        %656 = vmatprep.subr.bf16.mxu0 0
        %657 = vmatpush1.bf16.msra.mxu0 0
        %658 = vmatprep.subr.bf16.mxu0 0
        %659 = vmatpush1.bf16.msra.mxu0 0
        %660 = vmatprep.subr.bf16.mxu0 0
        %661 = vmatpush1.bf16.msra.mxu0 0
        %662 = vmatprep.subr.bf16.mxu0 0
        %663 = vmatpush1.bf16.msra.mxu0 0
        %664 = vmatprep.subr.bf16.mxu0 0
        %665 = vmatpush1.bf16.msra.mxu0 0
        %666 = vmatprep.subr.bf16.mxu0 0
        %667 = vmatpush1.bf16.msra.mxu0 0
        %668 = vmatprep.subr.bf16.mxu0 0
        %669 = vmatpush1.bf16.msra.mxu0 0
        %670 = vmatprep.subr.bf16.mxu0 0
        %671 = vmatpush1.bf16.msra.mxu0 0
        %672 = vmatprep.subr.bf16.mxu0 0
        %673 = vmatpush1.bf16.msra.mxu0 0
        %674 = vmatprep.mubr.bf16.mxu0 0
        %675 = vmatmul.mubr.bf16.gmra.mrb[0].mxu0 %v585
        %v676 = vpop.f32.mrb[0].mxu0
        %v677 = vadd.f32 %v487, %v676
        %v678 = vpop.f32.mrb[0].mxu0
        %v679 = vadd.f32 %v489, %v678
        %v680 = vpop.f32.mrb[0].mxu0
        %v681 = vadd.f32 %v491, %v680
        %v682 = vpop.f32.mrb[0].mxu0
        %v683 = vadd.f32 %v493, %v682
        %684 = vdwg.mxu0
        %s685 = scalar_lea.vmem [#allocation2], 288
        %v686 = vld [vmem:[%s685] sm:$0xff]
        %v687 = vld [vmem:[%s685 + $0x8] sm:$0xff]
        %v688 = vld [vmem:[%s685 + $0x10] sm:$0xff]
        %v689 = vld [vmem:[%s685 + $0x18] sm:$0xff]
        %v690 = vld [vmem:[%s685 + $0x20] sm:$0xff]
        %v691 = vld [vmem:[%s685 + $0x28] sm:$0xff]
        %v692 = vld [vmem:[%s685 + $0x30] sm:$0xff]
        %v693 = vld [vmem:[%s685 + $0x38] sm:$0xff]
        %v694 = vld [vmem:[%s685 + $0x40] sm:$0xff]
        %v695 = vld [vmem:[%s685 + $0x48] sm:$0xff]
        %v696 = vld [vmem:[%s685 + $0x50] sm:$0xff]
        %v697 = vld [vmem:[%s685 + $0x58] sm:$0xff]
        %v698 = vld [vmem:[%s685 + $0x60] sm:$0xff]
        %v699 = vld [vmem:[%s685 + $0x68] sm:$0xff]
        %v700 = vld [vmem:[%s685 + $0x70] sm:$0xff]
        %v701 = vld [vmem:[%s685 + $0x78] sm:$0xff]
        %v702 = vld [vmem:[%s685 + $0x80] sm:$0xff]
        %v703 = vld [vmem:[%s685 + $0x88] sm:$0xff]
        %vm704 = vcmask 1046528
        %v705 = vrot.slane %v287, 1
        %v706 = vrot.slane %v288, 1
        %v707 = vsel %vm704, %v705, %v706
        %v726 = vunpack.c.l.b16 %v686
        %v727 = vunpack.c.h.b16 %v686
        %v728 = vunpack.c.l.b16 %v687
        %v729 = vunpack.c.h.b16 %v687
        %v730 = vunpack.c.l.b16 %v688
        %v731 = vunpack.c.h.b16 %v688
        %v732 = vunpack.c.l.b16 %v689
        %v733 = vunpack.c.h.b16 %v689
        %v734 = vunpack.c.l.b16 %v690
        %v735 = vunpack.c.h.b16 %v690
        %v736 = vunpack.c.l.b16 %v691
        %v737 = vunpack.c.h.b16 %v691
        %v738 = vunpack.c.l.b16 %v692
        %v739 = vunpack.c.h.b16 %v692
        %v740 = vunpack.c.l.b16 %v693
        %v741 = vunpack.c.h.b16 %v693
        %v742 = vunpack.c.l.b16 %v694
        %v743 = vunpack.c.h.b16 %v694
        %v744 = vunpack.c.l.b16 %v695
        %v745 = vunpack.c.h.b16 %v695
        %v746 = vunpack.c.l.b16 %v696
        %v747 = vunpack.c.h.b16 %v696
        %v748 = vunpack.c.l.b16 %v697
        %v749 = vunpack.c.h.b16 %v697
        %v750 = vunpack.c.l.b16 %v698
        %v751 = vunpack.c.h.b16 %v698
        %v752 = vunpack.c.l.b16 %v699
        %v753 = vunpack.c.h.b16 %v699
        %v754 = vunpack.c.l.b16 %v700
        %v755 = vunpack.c.h.b16 %v700
        %v756 = vunpack.c.l.b16 %v701
        %v757 = vunpack.c.h.b16 %v701
        %v758 = vunpack.c.l.b16 %v702
        %v759 = vunpack.c.h.b16 %v702
        %v760 = vunpack.c.l.b16 %v703
        %v761 = vunpack.c.h.b16 %v703
        %v762 = vpack.c.b16 %v730, %v726
        %v763 = vpack.c.b16 %v731, %v727
        %v764 = vpack.c.b16 %v732, %v728
        %v765 = vpack.c.b16 %v733, %v729
        %v766 = vpack.c.b16 %v738, %v734
        %v767 = vpack.c.b16 %v739, %v735
        %v768 = vpack.c.b16 %v740, %v736
        %v769 = vpack.c.b16 %v741, %v737
        %v770 = vpack.c.b16 %v746, %v742
        %v771 = vpack.c.b16 %v747, %v743
        %v772 = vpack.c.b16 %v748, %v744
        %v773 = vpack.c.b16 %v749, %v745
        %v774 = vpack.c.b16 %v754, %v750
        %v775 = vpack.c.b16 %v755, %v751
        %v776 = vpack.c.b16 %v756, %v752
        %v777 = vpack.c.b16 %v757, %v753
        %v778 = vpack.c.b16 %v758, %v758
        %v779 = vpack.c.b16 %v759, %v759
        %v780 = vpack.c.b16 %v760, %v760
        %v781 = vpack.c.b16 %v761, %v761
        %v799 = vsel %vm392, %v707, 0
        %v802 = vsel %vm396, %v778, 0
        %v805 = vsel %vm396, %v779, 0
        %v808 = vsel %vm396, %v780, 0
        %v811 = vsel %vm396, %v781, 0
        %813 = vmatprep.subr.bf16.mxu0 %v763
        %814 = vmatpush1.bf16.msra.mxu0 %v762
        %815 = vmatprep.subr.bf16.mxu0 %v767
        %816 = vmatpush1.bf16.msra.mxu0 %v766
        %817 = vmatprep.subr.bf16.mxu0 %v771
        %818 = vmatpush1.bf16.msra.mxu0 %v770
        %819 = vmatprep.subr.bf16.mxu0 %v775
        %820 = vmatpush1.bf16.msra.mxu0 %v774
        %821 = vmatprep.subr.bf16.mxu0 %v805
        %822 = vmatpush1.bf16.msra.mxu0 %v802
        %823 = vmatprep.subr.bf16.mxu0 0
        %824 = vmatpush1.bf16.msra.mxu0 0
        %825 = vmatprep.subr.bf16.mxu0 0
        %826 = vmatpush1.bf16.msra.mxu0 0
        %827 = vmatprep.subr.bf16.mxu0 0
        %828 = vmatpush1.bf16.msra.mxu0 0
        %829 = vmatprep.subr.bf16.mxu0 0
        %830 = vmatpush1.bf16.msra.mxu0 0
        %831 = vmatprep.subr.bf16.mxu0 0
        %832 = vmatpush1.bf16.msra.mxu0 0
        %833 = vmatprep.subr.bf16.mxu0 0
        %834 = vmatpush1.bf16.msra.mxu0 0
        %835 = vmatprep.subr.bf16.mxu0 0
        %836 = vmatpush1.bf16.msra.mxu0 0
        %837 = vmatprep.subr.bf16.mxu0 0
        %838 = vmatpush1.bf16.msra.mxu0 0
        %839 = vmatprep.subr.bf16.mxu0 0
        %840 = vmatpush1.bf16.msra.mxu0 0
        %841 = vmatprep.subr.bf16.mxu0 0
        %842 = vmatpush1.bf16.msra.mxu0 0
        %843 = vmatprep.subr.bf16.mxu0 0
        %844 = vmatpush1.bf16.msra.mxu0 0
        %845 = vmatprep.mubr.bf16.mxu0 0
        %846 = vmatmul.mubr.bf16.gmra.mrb[0].mxu0 %v799
        %v847 = vpop.f32.mrb[0].mxu0
        %v848 = vadd.f32 0.0, %v847
        %v849 = vpop.f32.mrb[0].mxu0
        %v850 = vadd.f32 0.0, %v849
        %v851 = vpop.f32.mrb[0].mxu0
        %v852 = vadd.f32 0.0, %v851
        %v853 = vpop.f32.mrb[0].mxu0
        %v854 = vadd.f32 0.0, %v853
        %855 = vdwg.mxu0
        %856 = vmatprep.subr.bf16.mxu0 %v765
        %857 = vmatpush1.bf16.msra.mxu0 %v764
        %858 = vmatprep.subr.bf16.mxu0 %v769
        %859 = vmatpush1.bf16.msra.mxu0 %v768
        %860 = vmatprep.subr.bf16.mxu0 %v773
        %861 = vmatpush1.bf16.msra.mxu0 %v772
        %862 = vmatprep.subr.bf16.mxu0 %v777
        %863 = vmatpush1.bf16.msra.mxu0 %v776
        %864 = vmatprep.subr.bf16.mxu0 %v811
        %865 = vmatpush1.bf16.msra.mxu0 %v808
        %866 = vmatprep.subr.bf16.mxu0 0
        %867 = vmatpush1.bf16.msra.mxu0 0
        %868 = vmatprep.subr.bf16.mxu0 0
        %869 = vmatpush1.bf16.msra.mxu0 0
        %870 = vmatprep.subr.bf16.mxu0 0
        %871 = vmatpush1.bf16.msra.mxu0 0
        %872 = vmatprep.subr.bf16.mxu0 0
        %873 = vmatpush1.bf16.msra.mxu0 0
        %874 = vmatprep.subr.bf16.mxu0 0
        %875 = vmatpush1.bf16.msra.mxu0 0
        %876 = vmatprep.subr.bf16.mxu0 0
        %877 = vmatpush1.bf16.msra.mxu0 0
        %878 = vmatprep.subr.bf16.mxu0 0
        %879 = vmatpush1.bf16.msra.mxu0 0
        %880 = vmatprep.subr.bf16.mxu0 0
        %881 = vmatpush1.bf16.msra.mxu0 0
        %882 = vmatprep.subr.bf16.mxu0 0
        %883 = vmatpush1.bf16.msra.mxu0 0
        %884 = vmatprep.subr.bf16.mxu0 0
        %885 = vmatpush1.bf16.msra.mxu0 0
        %886 = vmatprep.subr.bf16.mxu0 0
        %887 = vmatpush1.bf16.msra.mxu0 0
        %888 = vmatprep.mubr.bf16.mxu0 0
        %889 = vmatmul.mubr.bf16.gmra.mrb[0].mxu0 %v799
        %v890 = vpop.f32.mrb[0].mxu0
        %v891 = vadd.f32 0.0, %v890
        %v892 = vpop.f32.mrb[0].mxu0
        %v893 = vadd.f32 0.0, %v892
        %v894 = vpop.f32.mrb[0].mxu0
        %v895 = vadd.f32 0.0, %v894
        %v896 = vpop.f32.mrb[0].mxu0
        %v897 = vadd.f32 0.0, %v896
        %898 = vdwg.mxu0
        %v899 = vadd.f32 %v634, %v848
        %v900 = vadd.f32 %v636, %v850
        %v901 = vadd.f32 %v677, %v891
        %v902 = vadd.f32 %v679, %v893
        %v903 = vadd.f32 %v638, %v852
        %v904 = vadd.f32 %v640, %v854
        %v905 = vadd.f32 %v681, %v895
        %v906 = vadd.f32 %v683, %v897
        %v907 = vld [vmem:[%s2] sm:$0xf]
        %v909 = vlaneseq
        %v910 = vshrl.u32 %v909, 7
        %v911 = vsub.s32 0, %v910
        %v912 = vrot.slane %v907, %v911
        %v913 = vlaneseq
        %v914 = vshrl.u32 %v913, 7
        %v915 = vsub.s32 1, %v914
        %v916 = vrot.slane %v907, %v915
        %v917 = vlaneseq
        %v918 = vshrl.u32 %v917, 7
        %v919 = vsub.s32 2, %v918
        %v920 = vrot.slane %v907, %v919
        %v921 = vlaneseq
        %v922 = vshrl.u32 %v921, 7
        %v923 = vsub.s32 3, %v922
        %v924 = vrot.slane %v907, %v923
        %v929 = vadd.f32 %v899, %v912
        %v930 = vadd.f32 %v900, %v916
        %v931 = vadd.f32 %v901, %v920
        %v932 = vadd.f32 %v902, %v924
        %v933 = vadd.f32 %v903, %v912
        %v934 = vadd.f32 %v904, %v916
        %v935 = vadd.f32 %v905, %v920
        %v936 = vadd.f32 %v906, %v924
        %v937 = vmax.f32 %v929, 0.0
        %v938 = vmax.f32 %v930, 0.0
        %v939 = vmax.f32 %v931, 0.0
        %v940 = vmax.f32 %v932, 0.0
        %v941 = vmax.f32 %v933, 0.0
        %v942 = vmax.f32 %v934, 0.0
        %v943 = vmax.f32 %v935, 0.0
        %v944 = vmax.f32 %v936, 0.0
        %v945 = vpack.c.bf16 %v941, %v937
        %v946 = vpack.c.bf16 %v942, %v938
        %v947 = vpack.c.bf16 %v943, %v939
        %v948 = vpack.c.bf16 %v944, %v940
        %v949 = vld [vmem:[%s3] sm:$0xff]
        %v950 = vld [vmem:[%s3 + $0x8] sm:$0xff]
        %v951 = vld [vmem:[%s3 + $0x10] sm:$0xff]
        %v952 = vld [vmem:[%s3 + $0x18] sm:$0xff]
        %v953 = vld [vmem:[%s3 + $0x20] sm:$0xff]
        %v954 = vld [vmem:[%s3 + $0x28] sm:$0xff]
        %v955 = vld [vmem:[%s3 + $0x30] sm:$0xff]
        %v956 = vld [vmem:[%s3 + $0x38] sm:$0xff]
        %v957 = vld [vmem:[%s3 + $0x40] sm:$0xff]
        %v958 = vld [vmem:[%s3 + $0x48] sm:$0xff]
        %v959 = vld [vmem:[%s3 + $0x50] sm:$0xff]
        %v960 = vld [vmem:[%s3 + $0x58] sm:$0xff]
        %v961 = vld [vmem:[%s3 + $0x60] sm:$0xff]
        %v962 = vld [vmem:[%s3 + $0x68] sm:$0xff]
        %v963 = vld [vmem:[%s3 + $0x70] sm:$0xff]
        %v964 = vld [vmem:[%s3 + $0x78] sm:$0xff]
        %v965 = vld [vmem:[%s3 + $0x80] sm:$0xff]
        %v966 = vld [vmem:[%s3 + $0x88] sm:$0xff]
        %v967 = vld [vmem:[%s3 + $0x90] sm:$0xff]
        %v968 = vld [vmem:[%s3 + $0x98] sm:$0xff]
        %v969 = vld [vmem:[%s3 + $0xa0] sm:$0xff]
        %v970 = vld [vmem:[%s3 + $0xa8] sm:$0xff]
        %v971 = vld [vmem:[%s3 + $0xb0] sm:$0xff]
        %v972 = vld [vmem:[%s3 + $0xb8] sm:$0xff]
        %v973 = vld [vmem:[%s3 + $0xc0] sm:$0xff]
        %v974 = vld [vmem:[%s3 + $0xc8] sm:$0xff]
        %v975 = vld [vmem:[%s3 + $0xd0] sm:$0xff]
        %v976 = vld [vmem:[%s3 + $0xd8] sm:$0xff]
        %v977 = vld [vmem:[%s3 + $0xe0] sm:$0xff]
        %v978 = vld [vmem:[%s3 + $0xe8] sm:$0xff]
        %v979 = vld [vmem:[%s3 + $0xf0] sm:$0xff]
        %v980 = vld [vmem:[%s3 + $0xf8] sm:$0xff]
        %v981 = vld [vmem:[%s3 + $0x100] sm:$0xff]
        %v982 = vld [vmem:[%s3 + $0x108] sm:$0xff]
        %v983 = vld [vmem:[%s3 + $0x110] sm:$0xff]
        %v984 = vld [vmem:[%s3 + $0x118] sm:$0xff]
        %v985 = vld [vmem:[%s3 + $0x120] sm:$0xff]
        %v986 = vld [vmem:[%s3 + $0x128] sm:$0xff]
        %v987 = vld [vmem:[%s3 + $0x130] sm:$0xff]
        %v988 = vld [vmem:[%s3 + $0x138] sm:$0xff]
        %v989 = vld [vmem:[%s3 + $0x140] sm:$0xff]
        %v990 = vld [vmem:[%s3 + $0x148] sm:$0xff]
        %v991 = vld [vmem:[%s3 + $0x150] sm:$0xff]
        %v992 = vld [vmem:[%s3 + $0x158] sm:$0xff]
        %v993 = vld [vmem:[%s3 + $0x160] sm:$0xff]
        %v994 = vld [vmem:[%s3 + $0x168] sm:$0xff]
        %v995 = vld [vmem:[%s3 + $0x170] sm:$0xff]
        %v996 = vld [vmem:[%s3 + $0x178] sm:$0xff]
        %v997 = vld [vmem:[%s3 + $0x180] sm:$0xff]
        %v998 = vld [vmem:[%s3 + $0x188] sm:$0xff]
        %v999 = vld [vmem:[%s3 + $0x190] sm:$0xff]
        %v1000 = vld [vmem:[%s3 + $0x198] sm:$0xff]
        %v1001 = vld [vmem:[%s3 + $0x1a0] sm:$0xff]
        %v1002 = vld [vmem:[%s3 + $0x1a8] sm:$0xff]
        %v1003 = vld [vmem:[%s3 + $0x1b0] sm:$0xff]
        %v1004 = vld [vmem:[%s3 + $0x1b8] sm:$0xff]
        %v1005 = vld [vmem:[%s3 + $0x1c0] sm:$0xff]
        %v1006 = vld [vmem:[%s3 + $0x1c8] sm:$0xff]
        %v1007 = vld [vmem:[%s3 + $0x1d0] sm:$0xff]
        %v1008 = vld [vmem:[%s3 + $0x1d8] sm:$0xff]
        %v1009 = vld [vmem:[%s3 + $0x1e0] sm:$0xff]
        %v1010 = vld [vmem:[%s3 + $0x1e8] sm:$0xff]
        %v1011 = vld [vmem:[%s3 + $0x1f0] sm:$0xff]
        %v1012 = vld [vmem:[%s3 + $0x1f8] sm:$0xff]
        %v1013 = vld [vmem:[%s4] sm:$0x3]
        %v1015 = vlaneseq
        %v1016 = vshrl.u32 %v1015, 7
        %v1017 = vsub.s32 0, %v1016
        %v1018 = vrot.slane %v1013, %v1017
        %v1019 = vlaneseq
        %v1020 = vshrl.u32 %v1019, 7
        %v1021 = vsub.s32 1, %v1020
        %v1022 = vrot.slane %v1013, %v1021
        %v1089 = vunpack.c.l.b16 %v949
        %v1090 = vunpack.c.h.b16 %v949
        %v1091 = vunpack.c.l.b16 %v950
        %v1092 = vunpack.c.h.b16 %v950
        %v1093 = vunpack.c.l.b16 %v951
        %v1094 = vunpack.c.h.b16 %v951
        %v1095 = vunpack.c.l.b16 %v952
        %v1096 = vunpack.c.h.b16 %v952
        %v1097 = vunpack.c.l.b16 %v953
        %v1098 = vunpack.c.h.b16 %v953
        %v1099 = vunpack.c.l.b16 %v954
        %v1100 = vunpack.c.h.b16 %v954
        %v1101 = vunpack.c.l.b16 %v955
        %v1102 = vunpack.c.h.b16 %v955
        %v1103 = vunpack.c.l.b16 %v956
        %v1104 = vunpack.c.h.b16 %v956
        %v1105 = vunpack.c.l.b16 %v957
        %v1106 = vunpack.c.h.b16 %v957
        %v1107 = vunpack.c.l.b16 %v958
        %v1108 = vunpack.c.h.b16 %v958
        %v1109 = vunpack.c.l.b16 %v959
        %v1110 = vunpack.c.h.b16 %v959
        %v1111 = vunpack.c.l.b16 %v960
        %v1112 = vunpack.c.h.b16 %v960
        %v1113 = vunpack.c.l.b16 %v961
        %v1114 = vunpack.c.h.b16 %v961
        %v1115 = vunpack.c.l.b16 %v962
        %v1116 = vunpack.c.h.b16 %v962
        %v1117 = vunpack.c.l.b16 %v963
        %v1118 = vunpack.c.h.b16 %v963
        %v1119 = vunpack.c.l.b16 %v964
        %v1120 = vunpack.c.h.b16 %v964
        %v1121 = vunpack.c.l.b16 %v965
        %v1122 = vunpack.c.h.b16 %v965
        %v1123 = vunpack.c.l.b16 %v966
        %v1124 = vunpack.c.h.b16 %v966
        %v1125 = vunpack.c.l.b16 %v967
        %v1126 = vunpack.c.h.b16 %v967
        %v1127 = vunpack.c.l.b16 %v968
        %v1128 = vunpack.c.h.b16 %v968
        %v1129 = vunpack.c.l.b16 %v969
        %v1130 = vunpack.c.h.b16 %v969
        %v1131 = vunpack.c.l.b16 %v970
        %v1132 = vunpack.c.h.b16 %v970
        %v1133 = vunpack.c.l.b16 %v971
        %v1134 = vunpack.c.h.b16 %v971
        %v1135 = vunpack.c.l.b16 %v972
        %v1136 = vunpack.c.h.b16 %v972
        %v1137 = vunpack.c.l.b16 %v973
        %v1138 = vunpack.c.h.b16 %v973
        %v1139 = vunpack.c.l.b16 %v974
        %v1140 = vunpack.c.h.b16 %v974
        %v1141 = vunpack.c.l.b16 %v975
        %v1142 = vunpack.c.h.b16 %v975
        %v1143 = vunpack.c.l.b16 %v976
        %v1144 = vunpack.c.h.b16 %v976
        %v1145 = vunpack.c.l.b16 %v977
        %v1146 = vunpack.c.h.b16 %v977
        %v1147 = vunpack.c.l.b16 %v978
        %v1148 = vunpack.c.h.b16 %v978
        %v1149 = vunpack.c.l.b16 %v979
        %v1150 = vunpack.c.h.b16 %v979
        %v1151 = vunpack.c.l.b16 %v980
        %v1152 = vunpack.c.h.b16 %v980
        %v1153 = vunpack.c.l.b16 %v981
        %v1154 = vunpack.c.h.b16 %v981
        %v1155 = vunpack.c.l.b16 %v982
        %v1156 = vunpack.c.h.b16 %v982
        %v1157 = vunpack.c.l.b16 %v983
        %v1158 = vunpack.c.h.b16 %v983
        %v1159 = vunpack.c.l.b16 %v984
        %v1160 = vunpack.c.h.b16 %v984
        %v1161 = vunpack.c.l.b16 %v985
        %v1162 = vunpack.c.h.b16 %v985
        %v1163 = vunpack.c.l.b16 %v986
        %v1164 = vunpack.c.h.b16 %v986
        %v1165 = vunpack.c.l.b16 %v987
        %v1166 = vunpack.c.h.b16 %v987
        %v1167 = vunpack.c.l.b16 %v988
        %v1168 = vunpack.c.h.b16 %v988
        %v1169 = vunpack.c.l.b16 %v989
        %v1170 = vunpack.c.h.b16 %v989
        %v1171 = vunpack.c.l.b16 %v990
        %v1172 = vunpack.c.h.b16 %v990
        %v1173 = vunpack.c.l.b16 %v991
        %v1174 = vunpack.c.h.b16 %v991
        %v1175 = vunpack.c.l.b16 %v992
        %v1176 = vunpack.c.h.b16 %v992
        %v1177 = vunpack.c.l.b16 %v993
        %v1178 = vunpack.c.h.b16 %v993
        %v1179 = vunpack.c.l.b16 %v994
        %v1180 = vunpack.c.h.b16 %v994
        %v1181 = vunpack.c.l.b16 %v995
        %v1182 = vunpack.c.h.b16 %v995
        %v1183 = vunpack.c.l.b16 %v996
        %v1184 = vunpack.c.h.b16 %v996
        %v1185 = vunpack.c.l.b16 %v997
        %v1186 = vunpack.c.h.b16 %v997
        %v1187 = vunpack.c.l.b16 %v998
        %v1188 = vunpack.c.h.b16 %v998
        %v1189 = vunpack.c.l.b16 %v999
        %v1190 = vunpack.c.h.b16 %v999
        %v1191 = vunpack.c.l.b16 %v1000
        %v1192 = vunpack.c.h.b16 %v1000
        %v1193 = vunpack.c.l.b16 %v1001
        %v1194 = vunpack.c.h.b16 %v1001
        %v1195 = vunpack.c.l.b16 %v1002
        %v1196 = vunpack.c.h.b16 %v1002
        %v1197 = vunpack.c.l.b16 %v1003
        %v1198 = vunpack.c.h.b16 %v1003
        %v1199 = vunpack.c.l.b16 %v1004
        %v1200 = vunpack.c.h.b16 %v1004
        %v1201 = vunpack.c.l.b16 %v1005
        %v1202 = vunpack.c.h.b16 %v1005
        %v1203 = vunpack.c.l.b16 %v1006
        %v1204 = vunpack.c.h.b16 %v1006
        %v1205 = vunpack.c.l.b16 %v1007
        %v1206 = vunpack.c.h.b16 %v1007
        %v1207 = vunpack.c.l.b16 %v1008
        %v1208 = vunpack.c.h.b16 %v1008
        %v1209 = vunpack.c.l.b16 %v1009
        %v1210 = vunpack.c.h.b16 %v1009
        %v1211 = vunpack.c.l.b16 %v1010
        %v1212 = vunpack.c.h.b16 %v1010
        %v1213 = vunpack.c.l.b16 %v1011
        %v1214 = vunpack.c.h.b16 %v1011
        %v1215 = vunpack.c.l.b16 %v1012
        %v1216 = vunpack.c.h.b16 %v1012
        %v1217 = vpack.c.b16 %v1091, %v1089
        %v1218 = vpack.c.b16 %v1092, %v1090
        %v1219 = vpack.c.b16 %v1095, %v1093
        %v1220 = vpack.c.b16 %v1096, %v1094
        %v1221 = vpack.c.b16 %v1099, %v1097
        %v1222 = vpack.c.b16 %v1100, %v1098
        %v1223 = vpack.c.b16 %v1103, %v1101
        %v1224 = vpack.c.b16 %v1104, %v1102
        %v1225 = vpack.c.b16 %v1107, %v1105
        %v1226 = vpack.c.b16 %v1108, %v1106
        %v1227 = vpack.c.b16 %v1111, %v1109
        %v1228 = vpack.c.b16 %v1112, %v1110
        %v1229 = vpack.c.b16 %v1115, %v1113
        %v1230 = vpack.c.b16 %v1116, %v1114
        %v1231 = vpack.c.b16 %v1119, %v1117
        %v1232 = vpack.c.b16 %v1120, %v1118
        %v1233 = vpack.c.b16 %v1123, %v1121
        %v1234 = vpack.c.b16 %v1124, %v1122
        %v1235 = vpack.c.b16 %v1127, %v1125
        %v1236 = vpack.c.b16 %v1128, %v1126
        %v1237 = vpack.c.b16 %v1131, %v1129
        %v1238 = vpack.c.b16 %v1132, %v1130
        %v1239 = vpack.c.b16 %v1135, %v1133
        %v1240 = vpack.c.b16 %v1136, %v1134
        %v1241 = vpack.c.b16 %v1139, %v1137
        %v1242 = vpack.c.b16 %v1140, %v1138
        %v1243 = vpack.c.b16 %v1143, %v1141
        %v1244 = vpack.c.b16 %v1144, %v1142
        %v1245 = vpack.c.b16 %v1147, %v1145
        %v1246 = vpack.c.b16 %v1148, %v1146
        %v1247 = vpack.c.b16 %v1151, %v1149
        %v1248 = vpack.c.b16 %v1152, %v1150
        %v1249 = vpack.c.b16 %v1155, %v1153
        %v1250 = vpack.c.b16 %v1156, %v1154
        %v1251 = vpack.c.b16 %v1159, %v1157
        %v1252 = vpack.c.b16 %v1160, %v1158
        %v1253 = vpack.c.b16 %v1163, %v1161
        %v1254 = vpack.c.b16 %v1164, %v1162
        %v1255 = vpack.c.b16 %v1167, %v1165
        %v1256 = vpack.c.b16 %v1168, %v1166
        %v1257 = vpack.c.b16 %v1171, %v1169
        %v1258 = vpack.c.b16 %v1172, %v1170
        %v1259 = vpack.c.b16 %v1175, %v1173
        %v1260 = vpack.c.b16 %v1176, %v1174
        %v1261 = vpack.c.b16 %v1179, %v1177
        %v1262 = vpack.c.b16 %v1180, %v1178
        %v1263 = vpack.c.b16 %v1183, %v1181
        %v1264 = vpack.c.b16 %v1184, %v1182
        %v1265 = vpack.c.b16 %v1187, %v1185
        %v1266 = vpack.c.b16 %v1188, %v1186
        %v1267 = vpack.c.b16 %v1191, %v1189
        %v1268 = vpack.c.b16 %v1192, %v1190
        %v1269 = vpack.c.b16 %v1195, %v1193
        %v1270 = vpack.c.b16 %v1196, %v1194
        %v1271 = vpack.c.b16 %v1199, %v1197
        %v1272 = vpack.c.b16 %v1200, %v1198
        %v1273 = vpack.c.b16 %v1203, %v1201
        %v1274 = vpack.c.b16 %v1204, %v1202
        %v1275 = vpack.c.b16 %v1207, %v1205
        %v1276 = vpack.c.b16 %v1208, %v1206
        %v1277 = vpack.c.b16 %v1211, %v1209
        %v1278 = vpack.c.b16 %v1212, %v1210
        %v1279 = vpack.c.b16 %v1215, %v1213
        %v1280 = vpack.c.b16 %v1216, %v1214
        %1345 = vmatprep.subr.bf16.mxu0 %v1218
        %1346 = vmatpush1.bf16.msra.mxu0 %v1217
        %1347 = vmatprep.subr.bf16.mxu0 %v1220
        %1348 = vmatpush1.bf16.msra.mxu0 %v1219
        %1349 = vmatprep.subr.bf16.mxu0 %v1222
        %1350 = vmatpush1.bf16.msra.mxu0 %v1221
        %1351 = vmatprep.subr.bf16.mxu0 %v1224
        %1352 = vmatpush1.bf16.msra.mxu0 %v1223
        %1353 = vmatprep.subr.bf16.mxu0 %v1226
        %1354 = vmatpush1.bf16.msra.mxu0 %v1225
        %1355 = vmatprep.subr.bf16.mxu0 %v1228
        %1356 = vmatpush1.bf16.msra.mxu0 %v1227
        %1357 = vmatprep.subr.bf16.mxu0 %v1230
        %1358 = vmatpush1.bf16.msra.mxu0 %v1229
        %1359 = vmatprep.subr.bf16.mxu0 %v1232
        %1360 = vmatpush1.bf16.msra.mxu0 %v1231
        %1361 = vmatprep.subr.bf16.mxu0 %v1234
        %1362 = vmatpush1.bf16.msra.mxu0 %v1233
        %1363 = vmatprep.subr.bf16.mxu0 %v1236
        %1364 = vmatpush1.bf16.msra.mxu0 %v1235
        %1365 = vmatprep.subr.bf16.mxu0 %v1238
        %1366 = vmatpush1.bf16.msra.mxu0 %v1237
        %1367 = vmatprep.subr.bf16.mxu0 %v1240
        %1368 = vmatpush1.bf16.msra.mxu0 %v1239
        %1369 = vmatprep.subr.bf16.mxu0 %v1242
        %1370 = vmatpush1.bf16.msra.mxu0 %v1241
        %1371 = vmatprep.subr.bf16.mxu0 %v1244
        %1372 = vmatpush1.bf16.msra.mxu0 %v1243
        %1373 = vmatprep.subr.bf16.mxu0 %v1246
        %1374 = vmatpush1.bf16.msra.mxu0 %v1245
        %1375 = vmatprep.subr.bf16.mxu0 %v1248
        %1376 = vmatpush1.bf16.msra.mxu0 %v1247
        %1377 = vmatprep.mubr.bf16.mxu0 %v946
        %1378 = vmatmul.mubr.bf16.gmra.mrb[0].mxu0 %v945
        %v1379 = vpop.f32.mrb[0].mxu0
        %v1380 = vadd.f32 %v1018, %v1379
        %v1381 = vpop.f32.mrb[0].mxu0
        %v1382 = vadd.f32 %v1022, %v1381
        %v1383 = vpop.f32.mrb[0].mxu0
        %v1384 = vadd.f32 %v1018, %v1383
        %v1385 = vpop.f32.mrb[0].mxu0
        %v1386 = vadd.f32 %v1022, %v1385
        %1387 = vdwg.mxu0
        %1388 = vmatprep.subr.bf16.mxu0 %v1250
        %1389 = vmatpush1.bf16.msra.mxu0 %v1249
        %1390 = vmatprep.subr.bf16.mxu0 %v1252
        %1391 = vmatpush1.bf16.msra.mxu0 %v1251
        %1392 = vmatprep.subr.bf16.mxu0 %v1254
        %1393 = vmatpush1.bf16.msra.mxu0 %v1253
        %1394 = vmatprep.subr.bf16.mxu0 %v1256
        %1395 = vmatpush1.bf16.msra.mxu0 %v1255
        %1396 = vmatprep.subr.bf16.mxu0 %v1258
        %1397 = vmatpush1.bf16.msra.mxu0 %v1257
        %1398 = vmatprep.subr.bf16.mxu0 %v1260
        %1399 = vmatpush1.bf16.msra.mxu0 %v1259
        %1400 = vmatprep.subr.bf16.mxu0 %v1262
        %1401 = vmatpush1.bf16.msra.mxu0 %v1261
        %1402 = vmatprep.subr.bf16.mxu0 %v1264
        %1403 = vmatpush1.bf16.msra.mxu0 %v1263
        %1404 = vmatprep.subr.bf16.mxu0 %v1266
        %1405 = vmatpush1.bf16.msra.mxu0 %v1265
        %1406 = vmatprep.subr.bf16.mxu0 %v1268
        %1407 = vmatpush1.bf16.msra.mxu0 %v1267
        %1408 = vmatprep.subr.bf16.mxu0 %v1270
        %1409 = vmatpush1.bf16.msra.mxu0 %v1269
        %1410 = vmatprep.subr.bf16.mxu0 %v1272
        %1411 = vmatpush1.bf16.msra.mxu0 %v1271
        %1412 = vmatprep.subr.bf16.mxu0 %v1274
        %1413 = vmatpush1.bf16.msra.mxu0 %v1273
        %1414 = vmatprep.subr.bf16.mxu0 %v1276
        %1415 = vmatpush1.bf16.msra.mxu0 %v1275
        %1416 = vmatprep.subr.bf16.mxu0 %v1278
        %1417 = vmatpush1.bf16.msra.mxu0 %v1277
        %1418 = vmatprep.subr.bf16.mxu0 %v1280
        %1419 = vmatpush1.bf16.msra.mxu0 %v1279
        %1420 = vmatprep.mubr.bf16.mxu0 %v948
        %1421 = vmatmul.mubr.bf16.gmra.mrb[0].mxu0 %v947
        %v1422 = vpop.f32.mrb[0].mxu0
        %v1423 = vadd.f32 %v1380, %v1422
        %v1424 = vpop.f32.mrb[0].mxu0
        %v1425 = vadd.f32 %v1382, %v1424
        %v1426 = vpop.f32.mrb[0].mxu0
        %v1427 = vadd.f32 %v1384, %v1426
        %v1428 = vpop.f32.mrb[0].mxu0
        %v1429 = vadd.f32 %v1386, %v1428
        %1430 = vdwg.mxu0
        %1431 = vst [vmem:[%s239] sm:$0xff] %v1423
        %1432 = vst [vmem:[%s239 + $0x8] sm:$0xff] %v1425
        %1433 = vst [vmem:[%s239 + $0x10] sm:$0xff] %v1427
        %1434 = vst [vmem:[%s239 + $0x18] sm:$0xff] %v1429
        %p1435 = scmp.lt.s32.totalorder %s17, 1
        %s1436 = scalar_select %p1435, %s17, 1
        %s1437 = smul.addr %s1436, 4
        %s1438 = smul.addr %s1437, 8
        %s1439 = scalar_lea.vmem %s5, %s1438
        // Predicated region
        $region45: #{_people_flow_forward.1} parent=39 // pred_check
          %p1440 = pneg %p145
        $region46: #{_people_flow_forward.1} parent=39 // pred_check_branch
          %1442 = sbr.rel (%p1440) target = $region48
        $region47: #{_people_flow_forward.1} parent=39 // pred_region
          _
        $region48: #{_people_flow_forward.1} parent=39 // pred_fallthru
          _
      $region40: #{_people_flow_forward.1} parent=5 // pred_fallthru
        _
      %p1443 = scmp.le.s32.totalorder 2, %s12
      // Predicated region
      $region49: #{_people_flow_forward.1} parent=5 // pred_check
        %p1444 = pneg %p1443
      $region50: #{_people_flow_forward.1} parent=5 // pred_check_branch
        %1446 = sbr.rel (%p1444) target = $region52
      $region51: #{_people_flow_forward.1} parent=5 // pred_region
        %s1447 = ssub.s32 %s12, 2
        // Predicated region
        $region53: #{_people_flow_forward.1} parent=51 // pred_check
          %p1448 = pneg %p151
        $region54: #{_people_flow_forward.1} parent=51 // pred_check_branch
          %1450 = sbr.rel (%p1448) target = $region56
        $region55: #{_people_flow_forward.1} parent=51 // pred_region
          %p1451 = scmp.lt.s32.totalorder %s18, 1
          %s1452 = scalar_select %p1451, %s18, 1
          %s1453 = smul.addr %s1452, 4
          %s1454 = smul.addr %s1453, 8
          %s1455 = scalar_lea.vmem %s5, %s1454
        $region56: #{_people_flow_forward.1} parent=51 // pred_fallthru
          _
      $region52: #{_people_flow_forward.1} parent=5 // pred_fallthru
        _
    $region6: #{_people_flow_forward.1} parent=1 // loop_footer
      %s16 = sadd.s32 1, %s12
    $region7: #{_people_flow_forward.1} parent=1 // loop_footer_branch
      %11 = sbr.rel target = $region3
    $region8: #{_people_flow_forward.1} parent=1 // loop_exit
      _
    %1456 = vsyncpa [#allocation3], 1
    %s1457 = scalar_lea.sflag [#allocation3], 1
    %1458 = vsyncpa %s1457, 1

</llo_original>
